<compile_context>
chip_gen: v7x
topology: tpu7x:2x2x1
jax: 0.10.0
libtpu: 0.0.40
codegen_flags: <defaults>
</compile_context>

<pallas_src>
import jax
import jax.numpy as jnp
from jax.experimental import pallas as pl
from jax.experimental.pallas import tpu as pltpu

LABEL_SMOOTHING = 0.1
CONFIDENCE = 1.0 - LABEL_SMOOTHING


def _ls_ce_kernel(n_ref, x_ref, t_ref, psum_ref):
    # n_ref:    SMEM (1,) int32  — true (unpadded) sample count N
    # x_ref:    (C, R, 128) native dtype — logits; classes on leading axis,
    #            samples on (sublane-row, lane)
    # t_ref:    (R, 128) int32   — target class per sample
    # psum_ref: (1, 1, 128) f32  — lane-dense masked partial loss sum of tile
    n = n_ref[0]
    c, r, l = x_ref.shape
    i = pl.program_id(0)

    # Global sample index of each (row, lane) slot; mask pad + edge-block
    # garbage BEFORE any arithmetic so stale VMEM can never produce NaN/Inf.
    row = jax.lax.broadcasted_iota(jnp.int32, (r, l), 0)
    lane = jax.lax.broadcasted_iota(jnp.int32, (r, l), 1)
    valid = (i * (r * l) + row * l + lane) < n                    # (R, L)

    x = x_ref[...].astype(jnp.float32)                            # (C, R, L)
    x = jnp.where(valid, x, 0.0)

    # Numerically-stable logsumexp over the class axis (8 slabs -> VPU maxes,
    # exp on the EUP slot, adds on the VPU).
    m = jnp.max(x, axis=0)                                        # (R, L)
    lse = m + jnp.log(jnp.sum(jnp.exp(x - m), axis=0))            # (R, L)

    # x[target] per sample via one-hot select over the class axis.
    t = t_ref[...]                                                # (R, L)
    cls = jax.lax.broadcasted_iota(jnp.int32, (c, r, l), 0)
    x_t = jnp.sum(jnp.where(cls == t, x, 0.0), axis=0)            # (R, L)

    mean_x = jnp.sum(x, axis=0) * (1.0 / c)                       # (R, L)

    # loss = conf*(lse - x_t) + smooth*(lse - mean_c(x))
    #      = lse - conf*x_t - smooth*mean_c(x)      (conf + smooth == 1)
    loss = lse - CONFIDENCE * x_t - LABEL_SMOOTHING * mean_x
    loss = jnp.where(valid, loss, 0.0)

    # Fold the sample reduction into the kernel: masked sublane-reduce to one
    # lane-dense 128-wide row per tile.
    psum_ref[...] = jnp.sum(loss, axis=0, keepdims=True).reshape(1, 1, l)


def _choose_tile(r_total, tile_n, num_classes, itemsize):
    """Pick the tile size (in 128-sample rows) + an explicit VMEM limit.

    Sized per generation: v5e/v6e have 128 MiB VMEM, v7x only 64 MiB.  The
    kernel body materializes ~6 f32 (C, tile) intermediates on top of the
    double-buffered native-dtype input block, so budget ~60% of capacity.
    """
    try:
        cap = pltpu.get_tpu_info().vmem_capacity_bytes
    except Exception:  # no hw info available -> assume the smallest (v7x)
        cap = 64 * 1024 * 1024
    per_sample = num_classes * (2 * itemsize + 6 * 4) + 2 * 4  # x(dbl) + temps + t(dbl)
    max_samples = max(2048, (int(cap * 0.6) // per_sample) // 128 * 128)
    samples = min(tile_n, max_samples)
    # Rows of 128 samples; keep a multiple of 16 so bf16 (16,128) tiling is
    # also satisfied, unless one tile covers the whole padded sample axis.
    r_tile = max(16, (samples // 128) // 16 * 16)
    if r_tile >= r_total:
        r_tile = r_total
    vmem_limit = max(32 * 1024 * 1024, int(cap * 0.7))
    return r_tile, vmem_limit


def label_smoothing_cross_entropy(x, target, *, tile_n=65536, class_major=False):
    """Mean label-smoothed cross entropy (matches the PyTorch module).

    x:      (N, C) logits by default; pass class_major=True with x of shape
            (C, N) to skip the wrapper transpose (preferred when the producer
            can emit class-major logits).  Any float dtype; DMA'd natively.
    target: (N,) integer class ids.
    """
    if class_major:
        C, N = x.shape
    else:
        N, C = x.shape

    r_total = pl.cdiv(N, 128)          # number of 128-sample lane rows
    n_pad = r_total * 128              # pad only to a lane multiple, not a tile

    r_tile, vmem_limit = _choose_tile(r_total, tile_n, C, jnp.dtype(x.dtype).itemsize)
    num_tiles = pl.cdiv(r_total, r_tile)   # edge tile is masked in-kernel

    # Layout plumbing — a single pass over x: pad + transpose fuse into one
    # copy (none at all when class_major=True); the minor-dim split reshape
    # to (C, r_total, 128) is free.
    if class_major:
        xc = jnp.pad(x, ((0, 0), (0, n_pad - N)))
    else:
        xc = jnp.pad(x, ((0, n_pad - N), (0, 0))).T
    x3 = xc.reshape(C, r_total, 128)
    t2 = jnp.pad(target.astype(jnp.int32), (0, n_pad - N)).reshape(r_total, 128)
    n_arr = jnp.array([N], dtype=jnp.int32)

    partials = pl.pallas_call(
        _ls_ce_kernel,
        out_shape=jax.ShapeDtypeStruct((num_tiles, 1, 128), jnp.float32),
        grid_spec=pltpu.PrefetchScalarGridSpec(
            num_scalar_prefetch=1,            # N -> SMEM
            grid=(num_tiles,),
            in_specs=[
                pl.BlockSpec((C, r_tile, 128), lambda i, n: (0, i, 0)),
                pl.BlockSpec((r_tile, 128), lambda i, n: (i, 0)),
            ],
            out_specs=pl.BlockSpec((1, 1, 128), lambda i, n: (i, 0, 0)),
        ),
        compiler_params=pltpu.CompilerParams(
            dimension_semantics=("parallel",),   # lets v7x shard over both TCs
            vmem_limit_bytes=vmem_limit,
        ),
    )(n_arr, x3, t2)

    # Tiny final reduction over the per-tile partial sums (padded/tail lanes
    # were already masked to zero inside the kernel).
    return jnp.sum(partials) / N


def _reference(x, target):
    logprobs = jax.nn.log_softmax(x.astype(jnp.float32), axis=1)
    nll = -jnp.take_along_axis(logprobs, target[:, None], axis=1)[:, 0]
    smooth = -jnp.mean(logprobs, axis=-1)
    return jnp.mean(CONFIDENCE * nll + LABEL_SMOOTHING * smooth)


if __name__ == "__main__":
    key = jax.random.PRNGKey(0)
    k1, k2, k3, k4, k5, k6 = jax.random.split(key, 6)

    # Small case: 16 points x 8 DALES classes — single padded tile.
    N, C = 16, 8
    x = jax.random.normal(k1, (N, C), dtype=jnp.float32)
    t = jax.random.randint(k2, (N,), 0, C, dtype=jnp.int32)
    out = jax.block_until_ready(label_smoothing_cross_entropy(x, t))
    ref = _reference(x, t)
    assert jnp.allclose(out, ref, atol=1e-5, rtol=1e-5), (out, ref)

    # Multi-tile ragged case: exercises the cdiv grid and in-kernel edge-block
    # tail masking (r_total=20 rows, r_tile=16 -> 2 tiles, partial last tile).
    N2 = 2500
    x2 = jax.random.normal(k3, (N2, C), dtype=jnp.float32)
    t2 = jax.random.randint(k4, (N2,), 0, C, dtype=jnp.int32)
    out2 = jax.block_until_ready(
        label_smoothing_cross_entropy(x2, t2, tile_n=1024))
    ref2 = _reference(x2, t2)
    assert jnp.allclose(out2, ref2, atol=1e-5, rtol=1e-5), (out2, ref2)

    # Native-dtype path: bf16 logits DMA'd as bf16, upcast in-kernel.
    N3 = 777
    x3 = jax.random.normal(k5, (N3, C), dtype=jnp.float32).astype(jnp.bfloat16)
    t3 = jax.random.randint(k6, (N3,), 0, C, dtype=jnp.int32)
    out3 = jax.block_until_ready(label_smoothing_cross_entropy(x3, t3))
    ref3 = _reference(x3.astype(jnp.float32), t3)
    assert jnp.allclose(out3, ref3, atol=1e-4, rtol=1e-4), (out3, ref3)

    print("KERNEL_OK")
</pallas_src>

<mosaic_0001>
module attributes {stable_mosaic.version = 11 : i64} {
  func.func @_ls_ce_kernel(%arg0: i32, %arg1: memref<1xi32, #tpu.memory_space<smem>>, %arg2: memref<8x1x128xf32, #tpu.memory_space<vmem>>, %arg3: memref<1x128xi32, #tpu.memory_space<vmem>>, %arg4: memref<1x1x128xf32, #tpu.memory_space<vmem>>) attributes {dimension_semantics = [#tpu.dimension_semantics<parallel>], iteration_bounds = array<i64: 1>, scalar_prefetch = 1 : i64, scratch_operands = 0 : i64, tpu.core_type = #tpu.core_type<tc>, window_params = [{transform_indices = @transform_0, window_bounds = array<i64: 8, 1, 128>}, {transform_indices = @transform_1, window_bounds = array<i64: 1, 128>}, {transform_indices = @transform_2, window_bounds = array<i64: 1, 1, 128>}]} {
    %c0 = arith.constant 0 : index
    %0 = memref.load %arg1[%c0] : memref<1xi32, #tpu.memory_space<smem>>
    %1 = tpu.iota {dimensions = array<i32: 0>} : vector<1x128xi32>
    %2 = tpu.iota {dimensions = array<i32: 1>} : vector<1x128xi32>
    %c128_i32 = arith.constant 128 : i32
    %3 = arith.muli %arg0, %c128_i32 : i32
    %c128_i32_0 = arith.constant 128 : i32
    %4 = vector.broadcast %c128_i32_0 : i32 to vector<1x128xi32>
    %5 = arith.muli %1, %4 : vector<1x128xi32>
    %6 = vector.broadcast %3 : i32 to vector<1x128xi32>
    %7 = arith.addi %6, %5 : vector<1x128xi32>
    %8 = arith.addi %7, %2 : vector<1x128xi32>
    %9 = vector.broadcast %0 : i32 to vector<1x128xi32>
    %10 = arith.cmpi slt, %8, %9 : vector<1x128xi32>
    %c0_1 = arith.constant 0 : index
    %c0_2 = arith.constant 0 : index
    %c0_3 = arith.constant 0 : index
    %11 = vector.load %arg2[%c0_1, %c0_2, %c0_3] : memref<8x1x128xf32, #tpu.memory_space<vmem>>, vector<8x1x128xf32>
    %cst = arith.constant 0.000000e+00 : f32
    %12 = vector.shape_cast %10 : vector<1x128xi1> to vector<1x1x128xi1>
    %13 = vector.broadcast %12 : vector<1x1x128xi1> to vector<8x1x128xi1>
    %14 = vector.broadcast %cst : f32 to vector<8x1x128xf32>
    %15 = arith.select %13, %11, %14 : vector<8x1x128xi1>, vector<8x1x128xf32>
    %cst_4 = arith.constant dense<0xFF800000> : vector<1x128xf32>
    %16 = vector.multi_reduction <maximumf>, %15, %cst_4 [0] : vector<8x1x128xf32> to vector<1x128xf32>
    %17 = vector.shape_cast %16 : vector<1x128xf32> to vector<1x1x128xf32>
    %18 = vector.broadcast %17 : vector<1x1x128xf32> to vector<8x1x128xf32>
    %19 = arith.subf %15, %18 : vector<8x1x128xf32>
    %20 = math.exp %19 : vector<8x1x128xf32>
    %cst_5 = arith.constant dense<0.000000e+00> : vector<1x128xf32>
    %21 = vector.multi_reduction <add>, %20, %cst_5 [0] : vector<8x1x128xf32> to vector<1x128xf32>
    %22 = math.log %21 : vector<1x128xf32>
    %23 = arith.addf %16, %22 : vector<1x128xf32>
    %c0_6 = arith.constant 0 : index
    %c0_7 = arith.constant 0 : index
    %24 = vector.load %arg3[%c0_6, %c0_7] : memref<1x128xi32, #tpu.memory_space<vmem>>, vector<1x128xi32>
    %25 = tpu.iota {dimensions = array<i32: 0>} : vector<8x1x128xi32>
    %26 = vector.shape_cast %24 : vector<1x128xi32> to vector<1x1x128xi32>
    %27 = vector.broadcast %26 : vector<1x1x128xi32> to vector<8x1x128xi32>
    %28 = arith.cmpi eq, %25, %27 : vector<8x1x128xi32>
    %cst_8 = arith.constant 0.000000e+00 : f32
    %29 = vector.broadcast %cst_8 : f32 to vector<8x1x128xf32>
    %30 = arith.select %28, %15, %29 : vector<8x1x128xi1>, vector<8x1x128xf32>
    %cst_9 = arith.constant dense<0.000000e+00> : vector<1x128xf32>
    %31 = vector.multi_reduction <add>, %30, %cst_9 [0] : vector<8x1x128xf32> to vector<1x128xf32>
    %cst_10 = arith.constant dense<0.000000e+00> : vector<1x128xf32>
    %32 = vector.multi_reduction <add>, %15, %cst_10 [0] : vector<8x1x128xf32> to vector<1x128xf32>
    %cst_11 = arith.constant 1.250000e-01 : f32
    %33 = vector.broadcast %cst_11 : f32 to vector<1x128xf32>
    %34 = arith.mulf %32, %33 : vector<1x128xf32>
    %cst_12 = arith.constant 0.899999976 : f32
    %35 = vector.broadcast %cst_12 : f32 to vector<1x128xf32>
    %36 = arith.mulf %35, %31 : vector<1x128xf32>
    %37 = arith.subf %23, %36 : vector<1x128xf32>
    %cst_13 = arith.constant 1.000000e-01 : f32
    %38 = vector.broadcast %cst_13 : f32 to vector<1x128xf32>
    %39 = arith.mulf %38, %34 : vector<1x128xf32>
    %40 = arith.subf %37, %39 : vector<1x128xf32>
    %cst_14 = arith.constant 0.000000e+00 : f32
    %41 = vector.broadcast %cst_14 : f32 to vector<1x128xf32>
    %42 = arith.select %10, %40, %41 : vector<1x128xi1>, vector<1x128xf32>
    %cst_15 = arith.constant dense<0.000000e+00> : vector<128xf32>
    %43 = vector.multi_reduction <add>, %42, %cst_15 [0] : vector<1x128xf32> to vector<128xf32>
    %44 = vector.shape_cast %43 : vector<128xf32> to vector<1x128xf32>
    %45 = vector.shape_cast %44 : vector<1x128xf32> to vector<1x1x128xf32>
    %c0_16 = arith.constant 0 : index
    %c0_17 = arith.constant 0 : index
    %c0_18 = arith.constant 0 : index
    %46 = vector.load %arg4[%c0_16, %c0_17, %c0_18] : memref<1x1x128xf32, #tpu.memory_space<vmem>>, vector<1x1x128xf32>
    tpu.vector_store %arg4[%c0_16, %c0_17, %c0_18], %45 {strides = array<i32>} : memref<1x1x128xf32, #tpu.memory_space<vmem>>, vector<1x1x128xf32>,
    return
  }
  func.func @transform_0(%arg0: i32, %arg1: memref<1xi32, #tpu.memory_space<smem>>) -> (i32, i32, i32) {
    %c0_i32 = arith.constant 0 : i32
    %c0_i32_0 = arith.constant 0 : i32
    %c0_i32_1 = arith.constant 0 : i32
    return %c0_i32, %arg0, %c0_i32_0 : i32, i32, i32
  }
  func.func @transform_1(%arg0: i32, %arg1: memref<1xi32, #tpu.memory_space<smem>>) -> (i32, i32) {
    %c0_i32 = arith.constant 0 : i32
    %c0_i32_0 = arith.constant 0 : i32
    return %arg0, %c0_i32 : i32, i32
  }
  func.func @transform_2(%arg0: i32, %arg1: memref<1xi32, #tpu.memory_space<smem>>) -> (i32, i32, i32) {
    %c0_i32 = arith.constant 0 : i32
    %c0_i32_0 = arith.constant 0 : i32
    %c0_i32_1 = arith.constant 0 : i32
    return %arg0, %c0_i32, %c0_i32_0 : i32, i32, i32
  }
}

</mosaic_0001>

<llo_original>
// kernel: tpu_custom_call.1
$region0: #{tpu_custom_call.1}
  #allocation0 [shape = 'u32[]', space=smem, size = 0x4, offset = 0x4, fixed_abs, tag = 'smem constant byte address 0x4 - core index']
  #allocation1 [shape = 'u32[144,128]{1,0:T(1,128)}', space=vmem, size = 0x12000, scoped, tag = 'internal scratch']
  #allocation2 [shape = 's32[1]{0}', space=sflag, size = 0x4, scoped, tag = 'scoped memory for tpu_custom_call.1']
  #allocation3 [shape = 's32[1]{0:T(128)S(6)}', space=smem, size = 0x200, scoped, tag = 'prefetched SMEM operand 0']
  %s0 = inlined_call_operand.<no memory space> [shape: s32[1], index: 0, kind: input, shape index: {}]
  %s1 = inlined_call_operand.hbm [shape: f32[8,1,128], index: 1, kind: input, shape index: {}]
  %s2 = inlined_call_operand.vmem [shape: s32[1,128], index: 2, kind: input, shape index: {}]
  %s3 = inlined_call_operand.hbm [shape: f32[1,1,128], index: 3, kind: output, shape index: {}]
  %s4 = sld [smem:[#allocation0]]
  $region22: #{tpu_custom_call.1} parent=0
    _
  %s6 = ssub.s32 1, %s4
  %s7 = scalar_select 0, %s6, %s4
  %8 = sst [smem:[#allocation3]] %s0
  $region1: #{tpu_custom_call.1} parent=0
    #allocation4 [shape = 'u8[4096]{0}', space=vmem, size = 0x1000, scoped, tag = 'input window, operand 1, single buffered']
    #allocation5 [shape = 's32[1]{0}', space=sflag, size = 0x4, scoped, tag = 'scoped memory for tpu_custom_call.1']
    #allocation6 [shape = 's32[1]{0}', space=sflag, size = 0x4, scoped, tag = 'scoped memory for tpu_custom_call.1']
    #allocation7 [shape = 'u8[512]{0}', space=vmem, size = 0x400, scoped, tag = 'output window, operand 0, single buffered']
    %9 = vsyncpa [#allocation5], 0
    %10 = vsyncpa [#allocation6], 0
    // Predicated region
    $region2: #{tpu_custom_call.1} parent=1 // pred_check
      _
    $region3: #{tpu_custom_call.1} parent=1 // pred_check_branch
      %12 = sbr.rel (0) target = $region5
    $region4: #{tpu_custom_call.1} parent=1 // pred_region
      %s14 = ssub.s32 128, 128
      %15 = vsyncadd [#allocation5], %s14
      %s16 = sshll.u32 [#allocation4], 4
      %s17 = int_to_ptr.vmem [resolvable:$true] %s16
      %22 = dma.hbm_to_vmem [thread:$0]  %s1, 128, %s17, [#allocation5], 16, 16, 1
    $region5: #{tpu_custom_call.1} parent=1 // pred_fallthru
      _
    // Predicated region
    $region6: #{tpu_custom_call.1} parent=1 // pred_check
      _
    $region7: #{tpu_custom_call.1} parent=1 // pred_check_branch
      %24 = sbr.rel (0) target = $region9
    $region8: #{tpu_custom_call.1} parent=1 // pred_region
      _
    $region9: #{tpu_custom_call.1} parent=1 // pred_fallthru
      _
    // Predicated region
    $region10: #{tpu_custom_call.1} parent=1 // pred_check
      _
    $region11: #{tpu_custom_call.1} parent=1 // pred_check_branch
      %26 = sbr.rel (0) target = $region13
    $region12: #{tpu_custom_call.1} parent=1 // pred_region
      %27 = dma.done [#allocation5], 128
    $region13: #{tpu_custom_call.1} parent=1 // pred_fallthru
      _
    %s28 = sld [smem:[#allocation3]]
    %v29 = vlaneseq
    %v30 = vshrl.u32 %v29, 7
    %v31 = vlaneseq
    %v32 = vand.u32 %v31, 127
    %s33 = smul.u32 0, 128
    %v34 = vmul.u32 %v30, 128
    %v35 = vstv %s33
    %v36 = vadd.s32 %v35, %v34
    %v37 = vadd.s32 %v36, %v32
    %v38 = vstv %s28
    %vm39 = vcmp.lt.s32.totalorder %v37, %v38
    %v40 = vld [vmem:[#allocation4] sm:$0x1]
    %v41 = vld [vmem:[#allocation4 + $0x1] sm:$0x1]
    %v42 = vld [vmem:[#allocation4 + $0x2] sm:$0x1]
    %v43 = vld [vmem:[#allocation4 + $0x3] sm:$0x1]
    %v44 = vld [vmem:[#allocation4 + $0x4] sm:$0x1]
    %v45 = vld [vmem:[#allocation4 + $0x5] sm:$0x1]
    %v46 = vld [vmem:[#allocation4 + $0x6] sm:$0x1]
    %v47 = vld [vmem:[#allocation4 + $0x7] sm:$0x1]
    %v48 = vsel %vm39, 1, 0
    %vm49 = vcmp.eq.s32.totalorder %v48, 1
    %v50 = vsel %vm49, %v40, 0.0
    %v51 = vsel %vm49, %v41, 0.0
    %v52 = vsel %vm49, %v42, 0.0
    %v53 = vsel %vm49, %v43, 0.0
    %v54 = vsel %vm49, %v44, 0.0
    %v55 = vsel %vm49, %v45, 0.0
    %v56 = vsel %vm49, %v46, 0.0
    %v57 = vsel %vm49, %v47, 0.0
    %vm58 = vcmask 1040384
    %v59 = vsel %vm58, %v50, -inf
    %v60 = vsel %vm58, %v51, -inf
    %v61 = vsel %vm58, %v52, -inf
    %v62 = vsel %vm58, %v53, -inf
    %v63 = vsel %vm58, %v54, -inf
    %v64 = vmax.f32 %v59, %v63
    %v65 = vsel %vm58, %v55, -inf
    %v66 = vmax.f32 %v60, %v65
    %v67 = vsel %vm58, %v56, -inf
    %v68 = vmax.f32 %v61, %v67
    %v69 = vsel %vm58, %v57, -inf
    %v70 = vmax.f32 %v62, %v69
    %v71 = vmax.f32 %v64, %v66
    %v72 = vmax.f32 %v68, %v70
    %v73 = vmax.f32 %v71, %v72
    %v74 = vsub.f32 %v50, %v73
    %v75 = vsub.f32 %v51, %v73
    %v76 = vsub.f32 %v52, %v73
    %v77 = vsub.f32 %v53, %v73
    %v78 = vsub.f32 %v54, %v73
    %v79 = vsub.f32 %v55, %v73
    %v80 = vsub.f32 %v56, %v73
    %v81 = vsub.f32 %v57, %v73
    %v82 = vmul.f32 %v74, 1.442695
    %v83 = vpow.pop %v82
    %v84 = vmul.f32 %v75, 1.442695
    %v85 = vpow.pop %v84
    %v86 = vmul.f32 %v76, 1.442695
    %v87 = vpow.pop %v86
    %v88 = vmul.f32 %v77, 1.442695
    %v89 = vpow.pop %v88
    %v90 = vmul.f32 %v78, 1.442695
    %v91 = vpow.pop %v90
    %v92 = vmul.f32 %v79, 1.442695
    %v93 = vpow.pop %v92
    %v94 = vmul.f32 %v80, 1.442695
    %v95 = vpow.pop %v94
    %v96 = vmul.f32 %v81, 1.442695
    %v97 = vpow.pop %v96
    %v98 = vsel %vm58, %v83, 0.0
    %v99 = vsel %vm58, %v85, 0.0
    %v100 = vadd.f32 %v98, %v99
    %v101 = vsel %vm58, %v87, 0.0
    %v102 = vadd.f32 %v100, %v101
    %v103 = vsel %vm58, %v89, 0.0
    %v104 = vadd.f32 %v102, %v103
    %v105 = vsel %vm58, %v91, 0.0
    %v106 = vadd.f32 %v104, %v105
    %v107 = vsel %vm58, %v93, 0.0
    %v108 = vadd.f32 %v106, %v107
    %v109 = vsel %vm58, %v95, 0.0
    %v110 = vadd.f32 %v108, %v109
    %v111 = vsel %vm58, %v97, 0.0
    %v112 = vadd.f32 %v110, %v111
    %v113 = vlog2.pop %v112
    %v114 = vmul.f32 %v113, 0.6931472
    %v115 = vadd.f32 %v73, %v114
    %v116 = vld [vmem:[%s2] sm:$0x1]
    %vm117 = vcmp.eq.s32.totalorder %v116, 0
    %vm118 = vcmp.eq.s32.totalorder %v116, 1
    %vm119 = vcmp.eq.s32.totalorder %v116, 2
    %vm120 = vcmp.eq.s32.totalorder %v116, 3
    %vm121 = vcmp.eq.s32.totalorder %v116, 4
    %vm122 = vcmp.eq.s32.totalorder %v116, 5
    %vm123 = vcmp.eq.s32.totalorder %v116, 6
    %vm124 = vcmp.eq.s32.totalorder %v116, 7
    %v125 = vsel %vm117, %v50, 0.0
    %v126 = vsel %vm118, %v51, 0.0
    %v127 = vsel %vm119, %v52, 0.0
    %v128 = vsel %vm120, %v53, 0.0
    %v129 = vsel %vm121, %v54, 0.0
    %v130 = vsel %vm122, %v55, 0.0
    %v131 = vsel %vm123, %v56, 0.0
    %v132 = vsel %vm124, %v57, 0.0
    %v133 = vsel %vm58, %v125, 0.0
    %v134 = vsel %vm58, %v126, 0.0
    %v135 = vadd.f32 %v133, %v134
    %v136 = vsel %vm58, %v127, 0.0
    %v137 = vadd.f32 %v135, %v136
    %v138 = vsel %vm58, %v128, 0.0
    %v139 = vadd.f32 %v137, %v138
    %v140 = vsel %vm58, %v129, 0.0
    %v141 = vadd.f32 %v139, %v140
    %v142 = vsel %vm58, %v130, 0.0
    %v143 = vadd.f32 %v141, %v142
    %v144 = vsel %vm58, %v131, 0.0
    %v145 = vadd.f32 %v143, %v144
    %v146 = vsel %vm58, %v132, 0.0
    %v147 = vadd.f32 %v145, %v146
    %v148 = vsel %vm58, %v50, 0.0
    %v149 = vsel %vm58, %v51, 0.0
    %v150 = vadd.f32 %v148, %v149
    %v151 = vsel %vm58, %v52, 0.0
    %v152 = vadd.f32 %v150, %v151
    %v153 = vsel %vm58, %v53, 0.0
    %v154 = vadd.f32 %v152, %v153
    %v155 = vsel %vm58, %v54, 0.0
    %v156 = vadd.f32 %v154, %v155
    %v157 = vsel %vm58, %v55, 0.0
    %v158 = vadd.f32 %v156, %v157
    %v159 = vsel %vm58, %v56, 0.0
    %v160 = vadd.f32 %v158, %v159
    %v161 = vsel %vm58, %v57, 0.0
    %v162 = vadd.f32 %v160, %v161
    %v163 = vmul.f32 %v162, 0.125
    %v164 = vmul.f32 %v147, 0.9
    %v165 = vsub.f32 %v115, %v164
    %v166 = vmul.f32 %v163, 0.1
    %v167 = vsub.f32 %v165, %v166
    %v168 = vsel %vm39, %v167, 0.0
    %v169 = vadd.f32 %v168, 0.0
    %170 = vst [vmem:[#allocation7] sm:$0x1] %v169
    // Predicated region
    $region14: #{tpu_custom_call.1} parent=1 // pred_check
      _
    $region15: #{tpu_custom_call.1} parent=1 // pred_check_branch
      %172 = sbr.rel (0) target = $region17
    $region16: #{tpu_custom_call.1} parent=1 // pred_region
      %s174 = ssub.s32 16, 16
      %175 = vsyncadd [#allocation6], %s174
      %s177 = sshll.u32 [#allocation7], 4
      %s178 = int_to_ptr.vmem [resolvable:$true] %s177
      %180 = dma.vmem_to_hbm [thread:$0]  %s178, 16, %s3, [#allocation6]
    $region17: #{tpu_custom_call.1} parent=1 // pred_fallthru
      _
    // Predicated region
    $region18: #{tpu_custom_call.1} parent=1 // pred_check
      _
    $region19: #{tpu_custom_call.1} parent=1 // pred_check_branch
      %182 = sbr.rel (0) target = $region21
    $region20: #{tpu_custom_call.1} parent=1 // pred_region
      %183 = dma.done [#allocation6], 16
    $region21: #{tpu_custom_call.1} parent=1 // pred_fallthru
      _
    %184 = vsyncpa [#allocation5], 1
    %185 = vsyncpa [#allocation6], 1

</llo_original>
